<compile_context>
chip_gen: v5e
topology: v5e:2x2
jax: 0.10.0
libtpu: 0.0.40
codegen_flags: <defaults>
</compile_context>

<pallas_src>
import jax
import jax.numpy as jnp
from jax.experimental import pallas as pl
from jax.experimental.pallas import tpu as pltpu


def _round_up(n, m):
    return ((n + m - 1) // m) * m


# ----------------------------------------------------------------------------
# Kernel: one fused matmul + bias, lane-dense padded output.
# ----------------------------------------------------------------------------
def fused_attn_kernel(x_ref, w_ref, b_ref, o_ref):
    # y = x @ W_fused + b ; W_fused = Wv^T @ Wout^T (exact for seq-len-1 attn)
    y = jnp.dot(x_ref[...], w_ref[...], preferred_element_type=jnp.float32)
    o_ref[...] = (y + b_ref[...]).astype(o_ref.dtype)


# ----------------------------------------------------------------------------
# One-time weight preparation (hoist OUT of the per-call / per-jit path).
# ----------------------------------------------------------------------------
def prepare_weights(w_qkv, w_out, b_out, *, weight_dtype=jnp.float32):
    """Fuse the V projection with the output projection and pad the output
    feature axis to a multiple of 128 lanes.

    w_qkv: (3*dim, dim) torch Linear layout; rows [2*dim:3*dim] are the V rows.
    Returns (w_fused (D, Dp), b_pad (1, Dp)) with Dp = round_up(D, 128)."""
    dim = w_out.shape[0]
    dp = _round_up(dim, 128)
    w_v_t = jnp.asarray(w_qkv, jnp.float32)[2 * dim:3 * dim, :].T   # (D, D) in->out
    w_out_t = jnp.asarray(w_out, jnp.float32).T                     # (D, D) in->out
    w_fused = (w_v_t @ w_out_t).astype(weight_dtype)                 # (D, D)
    w_fused = jnp.pad(w_fused, ((0, 0), (0, dp - dim)))              # (D, Dp)
    b_pad = jnp.pad(jnp.asarray(b_out, jnp.float32).reshape(1, dim),
                    ((0, 0), (0, dp - dim)))                         # (1, Dp)
    return w_fused, b_pad


# ----------------------------------------------------------------------------
# Batch-tile sizing from a VMEM budget (works for v5e/v6e/v7x defaults).
# ----------------------------------------------------------------------------
_VMEM_LIMIT_BYTES = 32 * 1024 * 1024   # explicit scoped-VMEM limit we request
_VMEM_BUDGET_BYTES = 24 * 1024 * 1024  # what we let the pipeline actually use


def _pick_batch_tile(batch, dim, dp, in_bytes, out_bytes=4):
    # Constant (weight + bias) blocks, double-buffered by the pipeline.
    weight_bytes = 2 * (dim * dp + dp) * 4
    # Per batch row: x tile in + y tile out, each double-buffered.
    per_row = 2 * (dim * in_bytes + dp * out_bytes)
    cap = max(8, (_VMEM_BUDGET_BYTES - weight_bytes) // max(per_row, 1))
    cap = (cap // 8) * 8
    tb = min(_round_up(batch, 8), max(cap, 8), 1024)
    return max(tb, 8)


# ----------------------------------------------------------------------------
# Wrapper: x (batch, dim) -> (batch, 1, dim), matching the PyTorch module.
# ----------------------------------------------------------------------------
def model_forward(x, w_fused, b_pad):
    batch, dim = x.shape
    dp = w_fused.shape[1]
    in_bytes = jnp.dtype(x.dtype).itemsize
    tb = _pick_batch_tile(batch, dim, dp, in_bytes)
    bp = _round_up(batch, tb)
    x_in = x if bp == batch else jnp.pad(x, ((0, bp - batch), (0, 0)))
    grid = (bp // tb,)

    flops = 2 * bp * dim * dp
    bytes_accessed = bp * dim * in_bytes + bp * dp * 4 + dim * dp * 4 + dp * 4

    out_padded = pl.pallas_call(
        fused_attn_kernel,
        out_shape=jax.ShapeDtypeStruct((bp, dp), jnp.float32),
        grid=grid,
        in_specs=[
            pl.BlockSpec((tb, dim), lambda i: (i, 0)),   # x tile over batch
            pl.BlockSpec((dim, dp), lambda i: (0, 0)),   # fused weight (const)
            pl.BlockSpec((1, dp), lambda i: (0, 0)),     # padded bias (const)
        ],
        out_specs=pl.BlockSpec((tb, dp), lambda i: (i, 0)),   # lane-dense store
        compiler_params=pltpu.CompilerParams(
            dimension_semantics=("parallel",),   # shards grid over TCs on v7x
            vmem_limit_bytes=_VMEM_LIMIT_BYTES,
        ),
        cost_estimate=pl.CostEstimate(
            flops=flops, transcendentals=0, bytes_accessed=bytes_accessed),
    )(x_in, w_fused, b_pad)

    # Strip batch/lane padding; reshape(batch, -1, dim) with seq=1.
    return out_padded[:batch, :dim].reshape(batch, 1, dim)


# ----------------------------------------------------------------------------
# Pure-JAX mirror of the PyTorch module (eval mode) for verification.
# ----------------------------------------------------------------------------
def reference_forward(x, w_qkv, w_out, b_out, num_heads):
    batch, dim = x.shape
    hd = dim // num_heads
    scale = float(dim) ** (-0.5)
    qkv = x @ w_qkv.T                                      # (B, 3D)
    qkv = qkv.reshape(batch, 1, 3, num_heads, hd).transpose(2, 0, 3, 1, 4)
    q, k, v = qkv[0], qkv[1], qkv[2]                       # (B, H, 1, hd)
    s = jnp.einsum("bhqd,bhkd->bhqk", q, k) * scale        # (B, H, 1, 1)
    a = jax.nn.softmax(s, axis=-1)                         # == ones
    o = jnp.einsum("bhqk,bhkd->bhqd", a, v)                # (B, H, 1, hd)
    o = o.reshape(batch, 1, dim)
    return o @ w_out.T + b_out


if __name__ == "__main__":
    batch, dim, num_heads = 8, 32, 8

    key = jax.random.PRNGKey(0)
    kx, kqkv, kwo, kbo = jax.random.split(key, 4)
    x = jax.random.normal(kx, (batch, dim), jnp.float32)
    w_qkv = jax.random.normal(kqkv, (3 * dim, dim), jnp.float32) * 0.1
    w_out = jax.random.normal(kwo, (dim, dim), jnp.float32) * 0.1
    b_out = jax.random.normal(kbo, (dim,), jnp.float32) * 0.1

    # One-time weight preparation (fusion + lane padding), out of per-call path.
    w_fused, b_pad = prepare_weights(w_qkv, w_out, b_out)

    y = model_forward(x, w_fused, b_pad)
    jax.block_until_ready(y)

    y_ref = reference_forward(x, w_qkv, w_out, b_out, num_heads)
    assert y.shape == (batch, 1, dim)
    assert jnp.allclose(y, y_ref, atol=1e-4, rtol=1e-4), "mismatch vs reference"

    print("KERNEL_OK")
</pallas_src>

<mosaic_0001>
module attributes {stable_mosaic.version = 11 : i64} {
  func.func @fused_attn_kernel(%arg0: i32, %arg1: memref<8x32xf32, #tpu.memory_space<vmem>>, %arg2: memref<32x128xf32, #tpu.memory_space<vmem>>, %arg3: memref<1x128xf32, #tpu.memory_space<vmem>>, %arg4: memref<8x128xf32, #tpu.memory_space<vmem>>) attributes {dimension_semantics = [#tpu.dimension_semantics<parallel>], iteration_bounds = array<i64: 1>, scalar_prefetch = 0 : i64, scratch_operands = 0 : i64, tpu.core_type = #tpu.core_type<tc>, window_params = [{transform_indices = @transform_0, window_bounds = array<i64: 8, 32>}, {pipeline_mode = #tpu.pipeline_mode<synchronous>, transform_indices = @transform_1, window_bounds = array<i64: 32, 128>}, {pipeline_mode = #tpu.pipeline_mode<synchronous>, transform_indices = @transform_2, window_bounds = array<i64: 1, 128>}, {transform_indices = @transform_3, window_bounds = array<i64: 8, 128>}]} {
    %c0 = arith.constant 0 : index
    %c0_0 = arith.constant 0 : index
    %0 = vector.load %arg1[%c0, %c0_0] : memref<8x32xf32, #tpu.memory_space<vmem>>, vector<8x32xf32>
    %c0_1 = arith.constant 0 : index
    %c0_2 = arith.constant 0 : index
    %1 = vector.load %arg2[%c0_1, %c0_2] : memref<32x128xf32, #tpu.memory_space<vmem>>, vector<32x128xf32>
    %cst = arith.constant dense<0.000000e+00> : vector<8x128xf32>
    %2 = tpu.matmul %0, %1, %cst {dimension_numbers = #tpu.dot_dimension_numbers<[1], [0], [0], [1], [0, 0, 1, 1], [], []>} : vector<8x32xf32>, vector<32x128xf32>, vector<8x128xf32> -> vector<8x128xf32>
    %c0_3 = arith.constant 0 : index
    %c0_4 = arith.constant 0 : index
    %3 = vector.load %arg3[%c0_3, %c0_4] : memref<1x128xf32, #tpu.memory_space<vmem>>, vector<1x128xf32>
    %4 = vector.broadcast %3 : vector<1x128xf32> to vector<8x128xf32>
    %5 = arith.addf %2, %4 : vector<8x128xf32>
    %c0_5 = arith.constant 0 : index
    %c0_6 = arith.constant 0 : index
    %6 = vector.load %arg4[%c0_5, %c0_6] : memref<8x128xf32, #tpu.memory_space<vmem>>, vector<8x128xf32>
    tpu.vector_store %arg4[%c0_5, %c0_6], %5 {strides = array<i32>} : memref<8x128xf32, #tpu.memory_space<vmem>>, vector<8x128xf32>,
    return
  }
  func.func @transform_0(%arg0: i32) -> (i32, i32) {
    %c0_i32 = arith.constant 0 : i32
    %c0_i32_0 = arith.constant 0 : i32
    return %arg0, %c0_i32 : i32, i32
  }
  func.func @transform_1(%arg0: i32) -> (i32, i32) {
    %c0_i32 = arith.constant 0 : i32
    %c0_i32_0 = arith.constant 0 : i32
    %c0_i32_1 = arith.constant 0 : i32
    return %c0_i32, %c0_i32_0 : i32, i32
  }
  func.func @transform_2(%arg0: i32) -> (i32, i32) {
    %c0_i32 = arith.constant 0 : i32
    %c0_i32_0 = arith.constant 0 : i32
    %c0_i32_1 = arith.constant 0 : i32
    return %c0_i32, %c0_i32_0 : i32, i32
  }
  func.func @transform_3(%arg0: i32) -> (i32, i32) {
    %c0_i32 = arith.constant 0 : i32
    %c0_i32_0 = arith.constant 0 : i32
    return %arg0, %c0_i32 : i32, i32
  }
}

</mosaic_0001>

<llo_original>
// kernel: tpu_custom_call.1
$region0: #{tpu_custom_call.1}
  #allocation0 [shape = 'u32[]', space=smem, size = 0x4, offset = 0x4, fixed_abs, tag = 'smem constant byte address 0x4 - core index']
  #allocation1 [shape = 'u32[72,128]{1,0:T(1,128)}', space=vmem, size = 0x9000, scoped, tag = 'internal scratch']
  %s0 = inlined_call_operand.hbm [shape: f32[8,32], index: 0, kind: input, shape index: {}]
  %s1 = inlined_call_operand.hbm [shape: f32[32,128], index: 1, kind: input, shape index: {}]
  %s2 = inlined_call_operand.vmem [shape: f32[1,128], index: 2, kind: input, shape index: {}]
  %s3 = inlined_call_operand.hbm [shape: f32[8,128], index: 3, kind: output, shape index: {}]
  %s4 = sld [smem:[#allocation0]]
  $region30: #{tpu_custom_call.1} parent=0
    _
  %s6 = ssub.s32 1, %s4
  %s7 = scalar_select 0, %s6, %s4
  $region1: #{tpu_custom_call.1} parent=0
    #allocation2 [shape = 'u8[4096]{0}', space=vmem, size = 0x1000, scoped, tag = 'input window, operand 0, single buffered']
    #allocation3 [shape = 's32[1]{0}', space=sflag, size = 0x4, scoped, tag = 'scoped memory for tpu_custom_call.1']
    #allocation4 [shape = 's32[1]{0}', space=sflag, size = 0x4, scoped, tag = 'scoped memory for tpu_custom_call.1']
    #allocation5 [shape = 'u8[16384]{0}', space=vmem, size = 0x4000, scoped, tag = 'input window, operand 1, single buffered']
    #allocation6 [shape = 's32[1]{0}', space=sflag, size = 0x4, scoped, tag = 'scoped memory for tpu_custom_call.1']
    #allocation7 [shape = 'u8[4096]{0}', space=vmem, size = 0x1000, scoped, tag = 'output window, operand 0, single buffered']
    %8 = vsyncpa [#allocation3], 0
    %9 = vsyncpa [#allocation6], 0
    %10 = vsyncpa [#allocation4], 0
    // Predicated region
    $region2: #{tpu_custom_call.1} parent=1 // pred_check
      _
    $region3: #{tpu_custom_call.1} parent=1 // pred_check_branch
      %12 = sbr.rel (0) target = $region5
    $region4: #{tpu_custom_call.1} parent=1 // pred_region
      %14 = vsyncadd [#allocation3], 0
      %s16 = sshll.u32 %s0, 4
      %s17 = int_to_ptr.hbm [resolvable:$true] %s16
      %s18 = sshll.u32 [#allocation2], 4
      %s19 = int_to_ptr.vmem [resolvable:$true] %s18
      %21 = dma.hbm_to_vmem [thread:$0]  %s17, 128, %s19, [#allocation3]
    $region5: #{tpu_custom_call.1} parent=1 // pred_fallthru
      _
    // Predicated region
    $region6: #{tpu_custom_call.1} parent=1 // pred_check
      _
    $region7: #{tpu_custom_call.1} parent=1 // pred_check_branch
      %23 = sbr.rel (0) target = $region9
    $region8: #{tpu_custom_call.1} parent=1 // pred_region
      %25 = vsyncadd [#allocation6], 0
      %s26 = sshll.u32 %s1, 4
      %s27 = int_to_ptr.hbm [resolvable:$true] %s26
      %s28 = sshll.u32 [#allocation5], 4
      %s29 = int_to_ptr.vmem [resolvable:$true] %s28
      %34 = dma.hbm_to_vmem [thread:$0]  %s27, 512, %s29, [#allocation6], 128, 128, 8
    $region9: #{tpu_custom_call.1} parent=1 // pred_fallthru
      _
    // Predicated region
    $region10: #{tpu_custom_call.1} parent=1 // pred_check
      _
    $region11: #{tpu_custom_call.1} parent=1 // pred_check_branch
      %36 = sbr.rel (0) target = $region13
    $region12: #{tpu_custom_call.1} parent=1 // pred_region
      _
    $region13: #{tpu_custom_call.1} parent=1 // pred_fallthru
      _
    // Predicated region
    $region14: #{tpu_custom_call.1} parent=1 // pred_check
      _
    $region15: #{tpu_custom_call.1} parent=1 // pred_check_branch
      %38 = sbr.rel (0) target = $region17
    $region16: #{tpu_custom_call.1} parent=1 // pred_region
      %40 = dma.done [#allocation3], 128
    $region17: #{tpu_custom_call.1} parent=1 // pred_fallthru
      _
    // Predicated region
    $region18: #{tpu_custom_call.1} parent=1 // pred_check
      _
    $region19: #{tpu_custom_call.1} parent=1 // pred_check_branch
      %42 = sbr.rel (0) target = $region21
    $region20: #{tpu_custom_call.1} parent=1 // pred_region
      %44 = dma.done [#allocation6], 512
    $region21: #{tpu_custom_call.1} parent=1 // pred_fallthru
      _
    %v45 = vld [vmem:[#allocation2] sm:$0xff]
    %v46 = vld [vmem:[#allocation5] sm:$0xff]
    %v47 = vld [vmem:[#allocation5 + $0x8] sm:$0xff]
    %v48 = vld [vmem:[#allocation5 + $0x10] sm:$0xff]
    %v49 = vld [vmem:[#allocation5 + $0x18] sm:$0xff]
    %v50 = vld [vmem:[%s2] sm:$0x1]
    %v52 = vperm.slane %v50, 0
    %vm54 = vcmask 261120
    %v56 = vsel %vm54, %v45, 0
    %58 = vmatpush.msra.mxu0 0.0
    %59 = vmatpush.msra.mxu0 0.0
    %60 = vmatpush.msra.mxu0 0.0
    %61 = vmatpush.msra.mxu0 0.0
    %62 = vmatpush.msra.mxu0 0.0
    %63 = vmatpush.msra.mxu0 0.0
    %64 = vmatpush.msra.mxu0 0.0
    %65 = vmatpush.msra.mxu0 0.0
    %66 = vmatpush.msra.mxu0 0.0
    %67 = vmatpush.msra.mxu0 0.0
    %68 = vmatpush.msra.mxu0 0.0
    %69 = vmatpush.msra.mxu0 0.0
    %70 = vmatpush.msra.mxu0 %v49
    %71 = vmatpush.msra.mxu0 %v48
    %72 = vmatpush.msra.mxu0 %v47
    %73 = vmatpush.msra.mxu0 %v46
    %74 = vmatmul.f32.gmra.mxu0 %v56
    %v75 = vpop.f32.mrf.mxu0
    %v76 = vadd.f32 %v52, %v75
    %77 = vdwg.mxu0
    %78 = vst [vmem:[#allocation7] sm:$0xff] %v76
    // Predicated region
    $region22: #{tpu_custom_call.1} parent=1 // pred_check
      _
    $region23: #{tpu_custom_call.1} parent=1 // pred_check_branch
      %80 = sbr.rel (0) target = $region25
    $region24: #{tpu_custom_call.1} parent=1 // pred_region
      %82 = vsyncadd [#allocation4], 0
      %s84 = sshll.u32 [#allocation7], 4
      %s85 = int_to_ptr.vmem [resolvable:$true] %s84
      %s86 = sshll.u32 %s3, 4
      %s87 = int_to_ptr.hbm [resolvable:$true] %s86
      %89 = dma.vmem_to_hbm [thread:$0]  %s85, 128, %s87, [#allocation4]
    $region25: #{tpu_custom_call.1} parent=1 // pred_fallthru
      _
    // Predicated region
    $region26: #{tpu_custom_call.1} parent=1 // pred_check
      _
    $region27: #{tpu_custom_call.1} parent=1 // pred_check_branch
      %91 = sbr.rel (0) target = $region29
    $region28: #{tpu_custom_call.1} parent=1 // pred_region
      %93 = dma.done [#allocation4], 128
    $region29: #{tpu_custom_call.1} parent=1 // pred_fallthru
      _
    %94 = vsyncpa [#allocation3], 1
    %95 = vsyncpa [#allocation6], 1
    %96 = vsyncpa [#allocation4], 1

</llo_original>
